<compile_context>
chip_gen: v5e
topology: v5e:2x2
jax: 0.10.0
libtpu: 0.0.40
codegen_flags: <defaults>
</compile_context>

<pallas_src>
import functools

import jax
import jax.numpy as jnp
from jax.experimental import pallas as pl
from jax.experimental.pallas import tpu as pltpu


def _adaptive_pooler_kernel(*refs, has_mask):
    if has_mask:
        x_ref, mask_ref, w_ref, b_ref, cw_ref, cb_ref, out_ref = refs
    else:
        x_ref, w_ref, b_ref, cw_ref, cb_ref, out_ref = refs
        mask_ref = None

    x = x_ref[...]                                   # (TB, S, D), native dtype
    TB, S, D = x.shape

    # --- scoring: VPU multiply with lane-dense weight row + cross-lane reduce.
    # Produces scores directly in (TB, S) layout (no N=1 matmul, no reshape
    # relayout).  f32 accumulation; bias is a cheap SMEM scalar read.
    w_row = w_ref[...].astype(x.dtype)               # (1, D)
    prod = x * w_row[None]                           # (TB, S, D)
    scores = jnp.sum(prod.astype(jnp.float32), axis=-1) + b_ref[0, 0]   # (TB, S)

    # --- softmax (+ optional mask renormalization), exact division.
    # softmax(s)*m / sum(softmax(s)*m) == exp(s-max)*m / sum(exp(s-max)*m)
    scores = scores - jnp.max(scores, axis=-1, keepdims=True)
    e = jnp.exp(scores)                              # (TB, S) f32
    if mask_ref is not None:
        e = e * mask_ref[...].astype(jnp.float32)
    # NOTE: an all-zero mask row yields inf/nan here, same as the PyTorch ref.
    weights = e / jnp.sum(e, axis=-1, keepdims=True)  # (TB, S) f32

    # --- pooling: VPU broadcast-multiply + sublane reduce over S, f32 accum.
    pooled = jnp.sum(weights[:, :, None] * x, axis=1)  # (TB, D) f32

    # TODO(synk): dropout is identity in eval/inference mode; not implemented.

    # --- classifier (D -> Lp), lane-dense MXU matmul, f32 accumulate + output.
    logits = jnp.dot(pooled.astype(cw_ref.dtype), cw_ref[...],
                     preferred_element_type=jnp.float32) + cb_ref[...]
    out_ref[...] = logits                            # f32 out


_TARGET_X_TILE_BYTES = 4 << 20   # aim >= ~4 MiB of x per grid step (HBM roofline)


def _round_up(n, m):
    return (n + m - 1) // m * m


def _vmem_capacity_bytes():
    """Physical VMEM per TensorCore (generation-aware) with a safe fallback."""
    try:
        cap = getattr(pltpu.get_tpu_info(), "vmem_capacity_bytes", None)
        if cap:
            return int(cap)
    except Exception:
        pass
    return 64 << 20   # conservative: v7x per-core VMEM (also safe on v5e/v6e)


def _plan_tiles(B, S, D, x_itemsize, Lp, has_mask):
    """Pick (block_b, padded_B, vmem_limit_bytes)."""
    cap = _vmem_capacity_bytes()
    # ~48 MiB on v7x (64 MiB physical), ~96 MiB on v5e/v6e (128 MiB physical).
    vmem_limit = int(min(cap * 3 // 4, 96 << 20))

    x_row = S * D * x_itemsize
    # Resident VMEM per batch row: double-buffered x (+ mask, + f32 out tile)
    # plus f32 compute temporaries (scoring/pooling products, score vectors).
    per_row = (2 * x_row
               + (2 * S * 4 if has_mask else 0)
               + 2 * Lp * 4
               + 2 * S * D * 4
               + 4 * S * 4
               + D * 4)
    fixed = D * Lp * x_itemsize + Lp * 4 + D * x_itemsize + (2 << 20)

    if B <= 8:
        return B, B, vmem_limit          # tiny batch: single full-batch block

    max_rows = max(8, (vmem_limit - fixed) // per_row)
    want_rows = max(8, -(-_TARGET_X_TILE_BYTES // x_row))
    block_b = max(8, (min(max_rows, want_rows) // 8) * 8)
    # Keep >= 2 grid steps so v7x's two TensorCores both get work on the
    # "parallel" batch axis; costs nothing on single-TC chips.
    block_b = min(block_b, max(8, _round_up(-(-B // 2), 8)))
    padded_b = _round_up(B, block_b)
    return block_b, padded_b, vmem_limit


def adaptive_pooler(x, w, b, cw, cb, mask=None, *, block_b=None):
    B, S, D = x.shape
    L = cw.shape[1]
    Lp = _round_up(L, 128)
    has_mask = mask is not None

    # Lane-dense classifier weights, shipped in x.dtype (accumulation stays f32).
    cw_p = jnp.zeros((D, Lp), x.dtype).at[:, :L].set(cw.astype(x.dtype))
    cb_p = jnp.zeros((1, Lp), jnp.float32).at[:, :L].set(cb.astype(jnp.float32))
    # Lane-dense score weight row and SMEM scalar bias.
    w_row = w.reshape(1, D).astype(x.dtype)
    b_sc = jnp.asarray(b, jnp.float32).reshape(1, 1)

    plan_bb, Bp, vmem_limit = _plan_tiles(B, S, D, x.dtype.itemsize, Lp, has_mask)
    if block_b is None:
        block_b = plan_bb
        Bp = _round_up(B, block_b)
    else:
        Bp = _round_up(B, block_b)

    if Bp != B:
        x = jnp.pad(x, ((0, Bp - B), (0, 0), (0, 0)))
        if has_mask:
            mask = jnp.pad(mask, ((0, Bp - B), (0, 0)), constant_values=1)

    in_specs = [pl.BlockSpec((block_b, S, D), lambda i: (i, 0, 0))]      # x
    inputs = [x]
    if has_mask:
        in_specs.append(pl.BlockSpec((block_b, S), lambda i: (i, 0)))    # mask
        inputs.append(mask)
    in_specs += [
        pl.BlockSpec((1, D), lambda i: (0, 0)),                # score weight row
        pl.BlockSpec(memory_space=pltpu.MemorySpace.SMEM),     # score bias (scalar)
        pl.BlockSpec((D, Lp), lambda i: (0, 0)),               # classifier weight
        pl.BlockSpec((1, Lp), lambda i: (0, 0)),               # classifier bias
    ]
    inputs += [w_row, b_sc, cw_p, cb_p]

    itemsize = x.dtype.itemsize
    cost = pl.CostEstimate(
        flops=2 * Bp * S * D            # scoring reduce
        + 2 * Bp * S * D                # pooling reduce
        + 2 * Bp * D * Lp               # classifier matmul
        + 8 * Bp * S,                   # softmax / renorm elementwise
        transcendentals=Bp * S,         # exp
        bytes_accessed=x.size * itemsize
        + (mask.size * mask.dtype.itemsize if has_mask else 0)
        + (w_row.size + cw_p.size) * itemsize
        + (b_sc.size + cb_p.size) * 4
        + Bp * Lp * 4,
    )

    out = pl.pallas_call(
        functools.partial(_adaptive_pooler_kernel, has_mask=has_mask),
        out_shape=jax.ShapeDtypeStruct((Bp, Lp), jnp.float32),
        grid_spec=pltpu.PrefetchScalarGridSpec(
            num_scalar_prefetch=0,
            grid=(Bp // block_b,),
            in_specs=in_specs,
            out_specs=pl.BlockSpec((block_b, Lp), lambda i: (i, 0)),
        ),
        compiler_params=pltpu.CompilerParams(
            dimension_semantics=("parallel",),
            vmem_limit_bytes=vmem_limit,
        ),
        cost_estimate=cost,
    )(*inputs)

    return out[:B, :L]


def reference(x, w, b, cw, cb, mask=None):
    """Pure-JAX reference mirroring the PyTorch forward (eval mode)."""
    scores = jnp.squeeze(x @ w, axis=-1) + b[0, 0]
    weights = jax.nn.softmax(scores, axis=-1)
    if mask is not None:
        weights = weights * mask
        weights = weights / jnp.sum(weights, axis=-1, keepdims=True)
    pooled = jnp.einsum("bs,bsd->bd", weights, x)
    return pooled @ cw + cb


if __name__ == "__main__":
    # Small shapes implied by the module: seq=8, d_model=32, labels=6.
    B, S, D, L = 2, 8, 32, 6
    key = jax.random.PRNGKey(0)
    kx, kw, kb, kcw, kcb, kx2, km = jax.random.split(key, 7)

    # Deterministic parameter init (shapes follow nn.Linear in the module).
    w = 0.05 * jax.random.normal(kw, (D, 1), dtype=jnp.float32)    # w.weight^T
    b = 0.05 * jax.random.normal(kb, (1, 1), dtype=jnp.float32)    # w.bias
    cw = 0.05 * jax.random.normal(kcw, (D, L), dtype=jnp.float32)  # classifier.weight^T
    cb = 0.05 * jax.random.normal(kcb, (1, L), dtype=jnp.float32)  # classifier.bias

    # Case 1: mask=None (default PyTorch path), tiny batch -> single block.
    x1 = jax.random.normal(kx, (B, S, D), dtype=jnp.float32)
    out1 = jax.block_until_ready(adaptive_pooler(x1, w, b, cw, cb))
    ref1 = reference(x1, w, b, cw, cb)
    assert out1.shape == (B, L)
    assert jnp.allclose(out1, ref1, atol=1e-4, rtol=1e-4), "mismatch (mask=None)"

    # Case 2: explicit mask, non-divisible batch -> exercises padding + 2-step grid.
    B2 = 20
    x2 = jax.random.normal(kx2, (B2, S, D), dtype=jnp.float32)
    mask2 = (jax.random.uniform(km, (B2, S)) > 0.3).astype(jnp.float32)
    mask2 = mask2.at[:, 0].set(1.0)                  # no all-zero mask rows
    out2 = jax.block_until_ready(adaptive_pooler(x2, w, b, cw, cb, mask=mask2))
    ref2 = reference(x2, w, b, cw, cb, mask=mask2)
    assert out2.shape == (B2, L)
    assert jnp.allclose(out2, ref2, atol=1e-4, rtol=1e-4), "mismatch (mask)"

    print("KERNEL_OK")
</pallas_src>

<mosaic_0001>
module attributes {stable_mosaic.version = 11 : i64} {
  func.func @_adaptive_pooler_kernel(%arg0: i32, %arg1: memref<2x8x32xf32, #tpu.memory_space<vmem>>, %arg2: memref<1x32xf32, #tpu.memory_space<vmem>>, %arg3: memref<1x1xf32, #tpu.memory_space<smem>>, %arg4: memref<32x128xf32, #tpu.memory_space<vmem>>, %arg5: memref<1x128xf32, #tpu.memory_space<vmem>>, %arg6: memref<2x128xf32, #tpu.memory_space<vmem>>) attributes {dimension_semantics = [#tpu.dimension_semantics<parallel>], iteration_bounds = array<i64: 1>, scalar_prefetch = 0 : i64, scratch_operands = 0 : i64, tpu.core_type = #tpu.core_type<tc>, window_params = [{transform_indices = @transform_0, window_bounds = array<i64: 2, 8, 32>}, {pipeline_mode = #tpu.pipeline_mode<synchronous>, transform_indices = @transform_1, window_bounds = array<i64: 1, 32>}, {transform_indices = @transform_2, window_bounds = array<i64: 1, 1>}, {pipeline_mode = #tpu.pipeline_mode<synchronous>, transform_indices = @transform_3, window_bounds = array<i64: 32, 128>}, {pipeline_mode = #tpu.pipeline_mode<synchronous>, transform_indices = @transform_4, window_bounds = array<i64: 1, 128>}, {transform_indices = @transform_5, window_bounds = array<i64: 2, 128>}]} {
    %c0 = arith.constant 0 : index
    %c0_0 = arith.constant 0 : index
    %c0_1 = arith.constant 0 : index
    %0 = vector.load %arg1[%c0, %c0_0, %c0_1] : memref<2x8x32xf32, #tpu.memory_space<vmem>>, vector<2x8x32xf32>
    %c0_2 = arith.constant 0 : index
    %c0_3 = arith.constant 0 : index
    %1 = vector.load %arg2[%c0_2, %c0_3] : memref<1x32xf32, #tpu.memory_space<vmem>>, vector<1x32xf32>
    %2 = vector.shape_cast %1 : vector<1x32xf32> to vector<1x1x32xf32>
    %3 = vector.broadcast %2 : vector<1x1x32xf32> to vector<2x8x32xf32>
    %4 = arith.mulf %0, %3 : vector<2x8x32xf32>
    %cst = arith.constant dense<0.000000e+00> : vector<2x8xf32>
    %5 = vector.multi_reduction <add>, %4, %cst [2] : vector<2x8x32xf32> to vector<2x8xf32>
    %c0_4 = arith.constant 0 : index
    %c0_5 = arith.constant 0 : index
    %6 = memref.load %arg3[%c0_4, %c0_5] : memref<1x1xf32, #tpu.memory_space<smem>>
    %7 = vector.broadcast %6 : f32 to vector<2x8xf32>
    %8 = arith.addf %5, %7 : vector<2x8xf32>
    %cst_6 = arith.constant dense<0xFF800000> : vector<2xf32>
    %9 = vector.multi_reduction <maximumf>, %8, %cst_6 [1] : vector<2x8xf32> to vector<2xf32>
    %10 = vector.shape_cast %9 : vector<2xf32> to vector<2x1xf32>
    %11 = vector.broadcast %10 : vector<2x1xf32> to vector<2x8xf32>
    %12 = arith.subf %8, %11 : vector<2x8xf32>
    %13 = math.exp %12 : vector<2x8xf32>
    %cst_7 = arith.constant dense<0.000000e+00> : vector<2xf32>
    %14 = vector.multi_reduction <add>, %13, %cst_7 [1] : vector<2x8xf32> to vector<2xf32>
    %15 = vector.shape_cast %14 : vector<2xf32> to vector<2x1xf32>
    %16 = vector.broadcast %15 : vector<2x1xf32> to vector<2x8xf32>
    %17 = arith.divf %13, %16 : vector<2x8xf32>
    %18 = vector.shape_cast %17 : vector<2x8xf32> to vector<2x8x1xf32>
    %19 = vector.broadcast %18 : vector<2x8x1xf32> to vector<2x8x32xf32>
    %20 = arith.mulf %19, %0 : vector<2x8x32xf32>
    %cst_8 = arith.constant dense<0.000000e+00> : vector<2x32xf32>
    %21 = vector.multi_reduction <add>, %20, %cst_8 [1] : vector<2x8x32xf32> to vector<2x32xf32>
    %c0_9 = arith.constant 0 : index
    %c0_10 = arith.constant 0 : index
    %22 = vector.load %arg4[%c0_9, %c0_10] : memref<32x128xf32, #tpu.memory_space<vmem>>, vector<32x128xf32>
    %cst_11 = arith.constant dense<0.000000e+00> : vector<2x128xf32>
    %23 = tpu.matmul %21, %22, %cst_11 {dimension_numbers = #tpu.dot_dimension_numbers<[1], [0], [0], [1], [0, 0, 1, 1], [], []>} : vector<2x32xf32>, vector<32x128xf32>, vector<2x128xf32> -> vector<2x128xf32>
    %c0_12 = arith.constant 0 : index
    %c0_13 = arith.constant 0 : index
    %24 = vector.load %arg5[%c0_12, %c0_13] : memref<1x128xf32, #tpu.memory_space<vmem>>, vector<1x128xf32>
    %25 = vector.broadcast %24 : vector<1x128xf32> to vector<2x128xf32>
    %26 = arith.addf %23, %25 : vector<2x128xf32>
    %c0_14 = arith.constant 0 : index
    %c0_15 = arith.constant 0 : index
    %27 = vector.load %arg6[%c0_14, %c0_15] : memref<2x128xf32, #tpu.memory_space<vmem>>, vector<2x128xf32>
    tpu.vector_store %arg6[%c0_14, %c0_15], %26 {strides = array<i32>} : memref<2x128xf32, #tpu.memory_space<vmem>>, vector<2x128xf32>,
    return
  }
  func.func @transform_0(%arg0: i32) -> (i32, i32, i32) {
    %c0_i32 = arith.constant 0 : i32
    %c0_i32_0 = arith.constant 0 : i32
    %c0_i32_1 = arith.constant 0 : i32
    return %arg0, %c0_i32, %c0_i32_0 : i32, i32, i32
  }
  func.func @transform_1(%arg0: i32) -> (i32, i32) {
    %c0_i32 = arith.constant 0 : i32
    %c0_i32_0 = arith.constant 0 : i32
    %c0_i32_1 = arith.constant 0 : i32
    return %c0_i32, %c0_i32_0 : i32, i32
  }
  func.func @transform_2(%arg0: i32) -> (i32, i32) {
    %c0_i32 = arith.constant 0 : i32
    %c0_i32_0 = arith.constant 0 : i32
    %c0_i32_1 = arith.constant 0 : i32
    return %c0_i32, %c0_i32_0 : i32, i32
  }
  func.func @transform_3(%arg0: i32) -> (i32, i32) {
    %c0_i32 = arith.constant 0 : i32
    %c0_i32_0 = arith.constant 0 : i32
    %c0_i32_1 = arith.constant 0 : i32
    return %c0_i32, %c0_i32_0 : i32, i32
  }
  func.func @transform_4(%arg0: i32) -> (i32, i32) {
    %c0_i32 = arith.constant 0 : i32
    %c0_i32_0 = arith.constant 0 : i32
    %c0_i32_1 = arith.constant 0 : i32
    return %c0_i32, %c0_i32_0 : i32, i32
  }
  func.func @transform_5(%arg0: i32) -> (i32, i32) {
    %c0_i32 = arith.constant 0 : i32
    %c0_i32_0 = arith.constant 0 : i32
    return %arg0, %c0_i32 : i32, i32
  }
}

</mosaic_0001>

<llo_original>
// kernel: tpu_custom_call.1
$region0: #{tpu_custom_call.1}
  #allocation0 [shape = 'u32[]', space=smem, size = 0x4, offset = 0x4, fixed_abs, tag = 'smem constant byte address 0x4 - core index']
  #allocation1 [shape = 'u32[72,128]{1,0:T(1,128)}', space=vmem, size = 0x9000, scoped, tag = 'internal scratch']
  #allocation2 [shape = 'f32[1,1]{1,0:T(1,128)S(6)}', space=smem, size = 0x200, scoped, tag = 'scoped memory for tpu_custom_call.1']
  %s0 = inlined_call_operand.hbm [shape: f32[2,8,32], index: 0, kind: input, shape index: {}]
  %s1 = inlined_call_operand.vmem [shape: f32[1,32], index: 1, kind: input, shape index: {}]
  %s2 = inlined_call_operand.<no memory space> [shape: f32[1,1], index: 2, kind: input, shape index: {}]
  %s3 = inlined_call_operand.hbm [shape: f32[32,128], index: 3, kind: input, shape index: {}]
  %s4 = inlined_call_operand.vmem [shape: f32[1,128], index: 4, kind: input, shape index: {}]
  %s5 = inlined_call_operand.hbm [shape: f32[2,128], index: 5, kind: output, shape index: {}]
  %s6 = sld [smem:[#allocation0]]
  $region38: #{tpu_custom_call.1} parent=0
    _
  %s8 = ssub.s32 1, %s6
  %s9 = scalar_select 0, %s8, %s6
  %10 = sst [smem:[#allocation2]] %s2
  $region1: #{tpu_custom_call.1} parent=0
    #allocation3 [shape = 'u8[8192]{0}', space=vmem, size = 0x2000, scoped, tag = 'input window, operand 0, single buffered']
    #allocation4 [shape = 's32[1]{0}', space=sflag, size = 0x4, scoped, tag = 'scoped memory for tpu_custom_call.1']
    #allocation5 [shape = 's32[1]{0}', space=sflag, size = 0x4, scoped, tag = 'scoped memory for tpu_custom_call.1']
    #allocation6 [shape = 'u8[16384]{0}', space=vmem, size = 0x4000, scoped, tag = 'input window, operand 3, single buffered']
    #allocation7 [shape = 's32[1]{0}', space=sflag, size = 0x4, scoped, tag = 'scoped memory for tpu_custom_call.1']
    #allocation8 [shape = 'u8[1024]{0}', space=vmem, size = 0x400, scoped, tag = 'output window, operand 0, single buffered']
    %11 = vsyncpa [#allocation4], 0
    %12 = vsyncpa [#allocation7], 0
    %13 = vsyncpa [#allocation5], 0
    // Predicated region
    $region2: #{tpu_custom_call.1} parent=1 // pred_check
      _
    $region3: #{tpu_custom_call.1} parent=1 // pred_check_branch
      %15 = sbr.rel (0) target = $region5
    $region4: #{tpu_custom_call.1} parent=1 // pred_region
      %17 = vsyncadd [#allocation4], 0
      %s18 = sshll.u32 %s0, 4
      %s19 = int_to_ptr.hbm [resolvable:$true] %s18
      %s20 = sshll.u32 [#allocation3], 4
      %s21 = int_to_ptr.vmem [resolvable:$true] %s20
      %26 = dma.hbm_to_vmem [thread:$0]  %s19, 256, %s21, [#allocation4], 128, 128, 8
    $region5: #{tpu_custom_call.1} parent=1 // pred_fallthru
      _
    // Predicated region
    $region6: #{tpu_custom_call.1} parent=1 // pred_check
      _
    $region7: #{tpu_custom_call.1} parent=1 // pred_check_branch
      %28 = sbr.rel (0) target = $region9
    $region8: #{tpu_custom_call.1} parent=1 // pred_region
      _
    $region9: #{tpu_custom_call.1} parent=1 // pred_fallthru
      _
    // Predicated region
    $region10: #{tpu_custom_call.1} parent=1 // pred_check
      _
    $region11: #{tpu_custom_call.1} parent=1 // pred_check_branch
      %30 = sbr.rel (0) target = $region13
    $region12: #{tpu_custom_call.1} parent=1 // pred_region
      _
    $region13: #{tpu_custom_call.1} parent=1 // pred_fallthru
      _
    // Predicated region
    $region14: #{tpu_custom_call.1} parent=1 // pred_check
      _
    $region15: #{tpu_custom_call.1} parent=1 // pred_check_branch
      %32 = sbr.rel (0) target = $region17
    $region16: #{tpu_custom_call.1} parent=1 // pred_region
      %34 = vsyncadd [#allocation7], 0
      %s35 = sshll.u32 %s3, 4
      %s36 = int_to_ptr.hbm [resolvable:$true] %s35
      %s37 = sshll.u32 [#allocation6], 4
      %s38 = int_to_ptr.vmem [resolvable:$true] %s37
      %43 = dma.hbm_to_vmem [thread:$0]  %s36, 512, %s38, [#allocation7], 128, 128, 8
    $region17: #{tpu_custom_call.1} parent=1 // pred_fallthru
      _
    // Predicated region
    $region18: #{tpu_custom_call.1} parent=1 // pred_check
      _
    $region19: #{tpu_custom_call.1} parent=1 // pred_check_branch
      %45 = sbr.rel (0) target = $region21
    $region20: #{tpu_custom_call.1} parent=1 // pred_region
      _
    $region21: #{tpu_custom_call.1} parent=1 // pred_fallthru
      _
    // Predicated region
    $region22: #{tpu_custom_call.1} parent=1 // pred_check
      _
    $region23: #{tpu_custom_call.1} parent=1 // pred_check_branch
      %47 = sbr.rel (0) target = $region25
    $region24: #{tpu_custom_call.1} parent=1 // pred_region
      %49 = dma.done [#allocation4], 256
    $region25: #{tpu_custom_call.1} parent=1 // pred_fallthru
      _
    // Predicated region
    $region26: #{tpu_custom_call.1} parent=1 // pred_check
      _
    $region27: #{tpu_custom_call.1} parent=1 // pred_check_branch
      %51 = sbr.rel (0) target = $region29
    $region28: #{tpu_custom_call.1} parent=1 // pred_region
      %53 = dma.done [#allocation7], 512
    $region29: #{tpu_custom_call.1} parent=1 // pred_fallthru
      _
    %v54 = vld [vmem:[#allocation3] sm:$0xff]
    %v55 = vld [vmem:[#allocation3 + $0x8] sm:$0xff]
    %v56 = vld [vmem:[%s1] sm:$0x1]
    %v58 = vperm.slane %v56, 0
    %v60 = vmul.f32 %v54, %v58
    %v61 = vmul.f32 %v55, %v58
    %vm62 = vcmask 261120
    %v63 = vsel %vm62, %v60, 0.0
    %64 = vadd.xlane.f32.xlu0 %v63
    %v65 = vpop.xlane.xlu0 %64
    %v66 = vsel %vm62, %v61, 0.0
    %67 = vadd.xlane.f32.xlu0 %v66
    %v68 = vpop.xlane.xlu0 %67
    %s69 = sld [smem:[#allocation2]]
    %v70 = vstv %s69
    %v71 = vadd.f32 %v65, %v70
    %v72 = vadd.f32 %v68, %v70
    %v75 = vlaneseq
    %v76 = vand.u32 %v75, 127
    %v77 = vperm.slane %v71, %v76
    %v78 = vperm.slane %v72, %v76
    %vm79 = vcmask 1041409
    %v80 = vsel %vm79, %v78, %v77
    %vm82 = vcmask 58368
    %v83 = vsel %vm82, %v80, -inf
    %84 = vmax.xlane.f32.xlu0 %v83
    %v85 = vpop.xlane.xlu0 %84
    %v87 = vperm.slane %v85, 0
    %v88 = vperm.slane %v85, 1
    %v91 = vsub.f32 %v71, %v87
    %v92 = vsub.f32 %v72, %v88
    %v93 = vmul.f32 %v91, 1.442695
    %v94 = vpow.pop %v93
    %v95 = vmul.f32 %v92, 1.442695
    %v96 = vpow.pop %v95
    %99 = vset.pattern.permute.xlu0 0
    %100 = vperm.xlu0 %99, %v94
    %v101 = vpop.permute.xlu0 %100
    %102 = vset.pattern.permute.xlu0 0
    %103 = vperm.xlu0 %102, %v96
    %v104 = vpop.permute.xlu0 %103
    %v105 = vperm.slane %v101, %v76
    %v106 = vperm.slane %v104, %v76
    %v107 = vsel %vm79, %v106, %v105
    %v109 = vsel %vm82, %v107, 0.0
    %110 = vadd.xlane.f32.xlu0 %v109
    %v111 = vpop.xlane.xlu0 %110
    %v113 = vperm.slane %v111, 0
    %v114 = vperm.slane %v111, 1
    %v117 = vrcp.pop %v113
    %v118 = vmul.f32 %v113, %v117
    %v119 = vsub.f32 1.0, %v118
    %v120 = vmul.f32 %v117, %v119
    %v121 = vadd.f32 %v117, %v120
    %vm122 = vweird.f32 %v113
    %vm123 = vweird.f32 %v117
    %vm124 = vmor %vm122, %vm123
    %v125 = vsel %vm124, %v117, %v121
    %v126 = vand.u32 2147483647, %v113
    %vm127 = vcmp.eq.f32.partialorder %v126, 8.507059e+37
    %v128 = vand.u32 %v113, 2147483648
    %v129 = vor.u32 1.1754944e-38, %v128
    %v130 = vsel %vm127, %v129, %v125
    %v131 = vmul.f32 %v94, %v130
    %v132 = vrcp.pop %v114
    %v133 = vmul.f32 %v114, %v132
    %v134 = vsub.f32 1.0, %v133
    %v135 = vmul.f32 %v132, %v134
    %v136 = vadd.f32 %v132, %v135
    %vm137 = vweird.f32 %v114
    %vm138 = vweird.f32 %v132
    %vm139 = vmor %vm137, %vm138
    %v140 = vsel %vm139, %v132, %v136
    %v141 = vand.u32 2147483647, %v114
    %vm142 = vcmp.eq.f32.partialorder %v141, 8.507059e+37
    %v143 = vand.u32 %v114, 2147483648
    %v144 = vor.u32 1.1754944e-38, %v143
    %v145 = vsel %vm142, %v144, %v140
    %v146 = vmul.f32 %v96, %v145
    %148 = vset.pattern.permute.xlu0 0
    %149 = vperm.xlu0 %148, %v131
    %v150 = vpop.permute.xlu0 %149
    %153 = vset.pattern.permute.xlu0 0
    %154 = vperm.xlu0 %153, %v146
    %v155 = vpop.permute.xlu0 %154
    %v157 = vmul.f32 %v150, %v54
    %v158 = vmul.f32 %v155, %v55
    %v159 = vsel %vm62, %v157, 0.0
    %v160 = vrot.slane %v159, 4
    %v161 = vadd.f32 %v159, %v160
    %v162 = vrot.slane %v161, 2
    %v163 = vadd.f32 %v161, %v162
    %v164 = vrot.slane %v163, 1
    %v165 = vadd.f32 %v163, %v164
    %v166 = vsel %vm62, %v158, 0.0
    %v167 = vrot.slane %v166, 4
    %v168 = vadd.f32 %v166, %v167
    %v169 = vrot.slane %v168, 2
    %v170 = vadd.f32 %v168, %v169
    %v171 = vrot.slane %v170, 1
    %v172 = vadd.f32 %v170, %v171
    %v173 = vld [vmem:[#allocation6] sm:$0xff]
    %v174 = vld [vmem:[#allocation6 + $0x8] sm:$0xff]
    %v175 = vld [vmem:[#allocation6 + $0x10] sm:$0xff]
    %v176 = vld [vmem:[#allocation6 + $0x18] sm:$0xff]
    %v177 = vld [vmem:[%s4] sm:$0x1]
    %v179 = vperm.slane %v177, 0
    %v183 = vsel %vm79, %v172, %v165
    %v184 = vsel %vm62, %v183, 0
    %186 = vmatpush.msra.mxu0 0.0
    %187 = vmatpush.msra.mxu0 0.0
    %188 = vmatpush.msra.mxu0 0.0
    %189 = vmatpush.msra.mxu0 0.0
    %190 = vmatpush.msra.mxu0 0.0
    %191 = vmatpush.msra.mxu0 0.0
    %192 = vmatpush.msra.mxu0 0.0
    %193 = vmatpush.msra.mxu0 0.0
    %194 = vmatpush.msra.mxu0 0.0
    %195 = vmatpush.msra.mxu0 0.0
    %196 = vmatpush.msra.mxu0 0.0
    %197 = vmatpush.msra.mxu0 0.0
    %198 = vmatpush.msra.mxu0 %v176
    %199 = vmatpush.msra.mxu0 %v175
    %200 = vmatpush.msra.mxu0 %v174
    %201 = vmatpush.msra.mxu0 %v173
    %202 = vmatmul.f32.gmra.mxu0 %v184
    %v203 = vpop.f32.mrf.mxu0
    %v204 = vadd.f32 %v179, %v203
    %205 = vdwg.mxu0
    %206 = vst [vmem:[#allocation8] sm:$0x3] %v204
    // Predicated region
    $region30: #{tpu_custom_call.1} parent=1 // pred_check
      _
    $region31: #{tpu_custom_call.1} parent=1 // pred_check_branch
      %208 = sbr.rel (0) target = $region33
    $region32: #{tpu_custom_call.1} parent=1 // pred_region
      %210 = vsyncadd [#allocation5], 0
      %s212 = sshll.u32 [#allocation8], 4
      %s213 = int_to_ptr.vmem [resolvable:$true] %s212
      %s214 = sshll.u32 %s5, 4
      %s215 = int_to_ptr.hbm [resolvable:$true] %s214
      %217 = dma.vmem_to_hbm [thread:$0]  %s213, 32, %s215, [#allocation5]
    $region33: #{tpu_custom_call.1} parent=1 // pred_fallthru
      _
    // Predicated region
    $region34: #{tpu_custom_call.1} parent=1 // pred_check
      _
    $region35: #{tpu_custom_call.1} parent=1 // pred_check_branch
      %219 = sbr.rel (0) target = $region37
    $region36: #{tpu_custom_call.1} parent=1 // pred_region
      %221 = dma.done [#allocation5], 32
    $region37: #{tpu_custom_call.1} parent=1 // pred_fallthru
      _
    %222 = vsyncpa [#allocation4], 1
    %223 = vsyncpa [#allocation7], 1
    %224 = vsyncpa [#allocation5], 1

</llo_original>
